<compile_context>
chip_gen: v5e
topology: v5e:2x2
jax: 0.10.0
libtpu: 0.0.40
codegen_flags: <defaults>
</compile_context>

<pallas_src>
import functools

import jax
import jax.numpy as jnp
from jax.experimental import pallas as pl
from jax.experimental.pallas import tpu as pltpu

# (name, row offset in packed slab, fan_out, fan_in)
_LAYERS = (("fc1", 0, 8, 4), ("fc2", 16, 16, 8), ("fc3", 32, 64, 16), ("fc4", 96, 3, 64))
_SLAB_ROWS = 112          # 96 + 3 outputs of fc4, padded up to a multiple of 16
_SLAB_COLS = 64           # max fan-in
_N_OUT = 3
_LANE = 128               # lane width; batch padding granularity
_MAX_BATCH_TILE = 1024    # lane-axis batch tile for large batches


def _round_up(n, m):
    return ((n + m - 1) // m) * m


def mlp_kernel(x_ref, w_ref, b_ref, o_ref):
    # x_ref: (4, TB) bf16 (batch on lanes), w_ref: (112, 64) bf16 packed slab,
    # b_ref: (112, 1) f32 packed biases, o_ref: (3, TB) f32.
    x = x_ref[...]

    w1 = w_ref[0:8, 0:4]
    w2 = w_ref[16:32, 0:8]
    w3 = w_ref[32:96, 0:16]
    w4 = w_ref[96:99, 0:64]
    b1 = b_ref[0:8, :]
    b2 = b_ref[16:32, :]
    b3 = b_ref[32:96, :]
    b4 = b_ref[96:99, :]

    # bf16 MXU inputs, f32 accumulation; bias add + tanh in f32 (EUP).
    h = jnp.dot(w1, x, preferred_element_type=jnp.float32)        # (8, TB)
    h = jnp.tanh(h + b1).astype(jnp.bfloat16)
    h = jnp.dot(w2, h, preferred_element_type=jnp.float32)        # (16, TB)
    h = jnp.tanh(h + b2).astype(jnp.bfloat16)
    h = jnp.dot(w3, h, preferred_element_type=jnp.float32)        # (64, TB)
    h = jnp.tanh(h + b3).astype(jnp.bfloat16)
    h = jnp.dot(w4, h, preferred_element_type=jnp.float32)        # (3, TB)
    o_ref[...] = (h + b4).astype(o_ref.dtype)


@functools.partial(jax.jit, static_argnames=("batch_tile",))
def _mlp_pallas(xt_padded, wslab, bslab, *, batch_tile):
    fin, bp = xt_padded.shape                         # (4, B_padded)
    grid = (bp // batch_tile,)
    return pl.pallas_call(
        mlp_kernel,
        out_shape=jax.ShapeDtypeStruct((_N_OUT, bp), jnp.float32),
        grid=grid,
        in_specs=[
            pl.BlockSpec((fin, batch_tile), lambda i: (0, i)),          # streamed
            pl.BlockSpec((_SLAB_ROWS, _SLAB_COLS), lambda i: (0, 0)),   # resident
            pl.BlockSpec((_SLAB_ROWS, 1), lambda i: (0, 0)),            # resident
        ],
        out_specs=pl.BlockSpec((_N_OUT, batch_tile), lambda i: (0, i)),
        compiler_params=pltpu.CompilerParams(
            dimension_semantics=("parallel",)),
    )(xt_padded, wslab, bslab)


def neural_network_forward(x, packed, *, max_batch_tile=_MAX_BATCH_TILE):
    """x: (B, 4) (or (4,)) float32.  packed: (wslab bf16 (112,64), bslab f32 (112,1))."""
    wslab, bslab = packed
    if x.ndim == 1:                       # mirror torch `x.dim() == 1` unsqueeze
        x = x[None, :]
    x = x.reshape(x.shape[0], -1)         # torch.flatten(start_dim=1)
    b = x.shape[0]

    # Adaptive lane-axis batch tile: multiple of 128, capped at max_batch_tile.
    batch_tile = min(max_batch_tile, _round_up(b, _LANE))
    bp = _round_up(b, batch_tile)

    # Batch onto the lane axis, padded; cast to bf16 for half the input DMA bytes.
    xt = jnp.pad(x, ((0, bp - b), (0, 0))).T.astype(jnp.bfloat16)   # (4, Bp)

    out_t = _mlp_pallas(xt, wslab, bslab, batch_tile=batch_tile)    # (3, Bp)
    return out_t.T[:b]                                              # (B, 3)


def init_params(key):
    """Deterministic synthetic init in PyTorch nn.Linear layout: W (out, in), b (out,)."""
    params = {}
    for name, _, fout, fin in _LAYERS:
        key, kw, kb = jax.random.split(key, 3)
        bound = 1.0 / jnp.sqrt(fin)
        params[name] = (
            jax.random.uniform(kw, (fout, fin), jnp.float32, -bound, bound),
            jax.random.uniform(kb, (fout,), jnp.float32, -bound, bound),
        )
    return params


def pack_params(params):
    """Pack the 4 weights into one (112, 64) bf16 slab and biases into one (112, 1) f32 slab."""
    wslab = jnp.zeros((_SLAB_ROWS, _SLAB_COLS), jnp.float32)
    bslab = jnp.zeros((_SLAB_ROWS, 1), jnp.float32)
    for name, row, fout, fin in _LAYERS:
        w, bias = params[name]
        wslab = wslab.at[row:row + fout, :fin].set(w)
        bslab = bslab.at[row:row + fout, 0].set(bias)
    return wslab.astype(jnp.bfloat16), bslab


def reference_forward_bf16(x, params):
    """Pure-jnp reference mirroring the kernel's bf16 MXU inputs / f32 elementwise math."""
    if x.ndim == 1:
        x = x[None, :]
    h = x.reshape(x.shape[0], -1).astype(jnp.bfloat16)
    for i, (name, _, _, _) in enumerate(_LAYERS):
        w, bias = params[name]
        h = jnp.dot(h, w.T.astype(jnp.bfloat16),
                    preferred_element_type=jnp.float32) + bias
        if i < len(_LAYERS) - 1:
            h = jnp.tanh(h).astype(jnp.bfloat16)
    return h.astype(jnp.float32)


def reference_forward_f32(x, params):
    """Torch-faithful full-f32 reference."""
    if x.ndim == 1:
        x = x[None, :]
    h = x.reshape(x.shape[0], -1)
    for i, (name, _, _, _) in enumerate(_LAYERS):
        w, bias = params[name]
        h = jnp.dot(h, w.T, preferred_element_type=jnp.float32) + bias
        if i < len(_LAYERS) - 1:
            h = jnp.tanh(h)
    return h


if __name__ == "__main__":
    key = jax.random.PRNGKey(0)
    params = init_params(key)
    packed = pack_params(params)

    # Small demo batch (B=8, features=4) + an odd-sized multi-tile batch.
    for b in (8, 1300):
        key, kx = jax.random.split(key)
        x = jax.random.normal(kx, (b, 4), dtype=jnp.float32)

        out = neural_network_forward(x, packed)
        out = jax.block_until_ready(out)
        assert out.shape == (b, 3), out.shape

        ref_bf16 = reference_forward_bf16(x, params)
        ref_f32 = reference_forward_f32(x, params)
        err_bf16 = jnp.max(jnp.abs(out - ref_bf16))
        err_f32 = jnp.max(jnp.abs(out - ref_f32))
        assert jnp.allclose(out, ref_bf16, atol=2e-2, rtol=2e-2), \
            f"B={b}: max abs err vs bf16-mirror ref {err_bf16}"
        assert jnp.allclose(out, ref_f32, atol=5e-2, rtol=5e-2), \
            f"B={b}: max abs err vs f32 ref {err_f32}"

    print("KERNEL_OK")
</pallas_src>

<mosaic_0001>
module attributes {stable_mosaic.version = 11 : i64} {
  func.func @mlp_kernel(%arg0: i32, %arg1: memref<4x128xbf16, #tpu.memory_space<vmem>>, %arg2: memref<112x64xbf16, #tpu.memory_space<vmem>>, %arg3: memref<112x1xf32, #tpu.memory_space<vmem>>, %arg4: memref<3x128xf32, #tpu.memory_space<vmem>>) attributes {dimension_semantics = [#tpu.dimension_semantics<parallel>], iteration_bounds = array<i64: 1>, scalar_prefetch = 0 : i64, scratch_operands = 0 : i64, tpu.core_type = #tpu.core_type<tc>, window_params = [{transform_indices = @transform_0, window_bounds = array<i64: 4, 128>}, {pipeline_mode = #tpu.pipeline_mode<synchronous>, transform_indices = @transform_1, window_bounds = array<i64: 112, 64>}, {pipeline_mode = #tpu.pipeline_mode<synchronous>, transform_indices = @transform_2, window_bounds = array<i64: 112, 1>}, {transform_indices = @transform_3, window_bounds = array<i64: 3, 128>}]} {
    %c0 = arith.constant 0 : index
    %c0_0 = arith.constant 0 : index
    %0 = vector.load %arg1[%c0, %c0_0] : memref<4x128xbf16, #tpu.memory_space<vmem>>, vector<4x128xbf16>
    %c0_1 = arith.constant 0 : index
    %c0_2 = arith.constant 0 : index
    %1 = vector.load %arg2[%c0_1, %c0_2] : memref<112x64xbf16, #tpu.memory_space<vmem>>, vector<8x4xbf16>
    %c16 = arith.constant 16 : index
    %c0_3 = arith.constant 0 : index
    %2 = vector.load %arg2[%c16, %c0_3] : memref<112x64xbf16, #tpu.memory_space<vmem>>, vector<16x8xbf16>
    %c32 = arith.constant 32 : index
    %c0_4 = arith.constant 0 : index
    %3 = vector.load %arg2[%c32, %c0_4] : memref<112x64xbf16, #tpu.memory_space<vmem>>, vector<64x16xbf16>
    %c96 = arith.constant 96 : index
    %c0_5 = arith.constant 0 : index
    %4 = vector.load %arg2[%c96, %c0_5] : memref<112x64xbf16, #tpu.memory_space<vmem>>, vector<3x64xbf16>
    %c0_6 = arith.constant 0 : index
    %c0_7 = arith.constant 0 : index
    %5 = vector.load %arg3[%c0_6, %c0_7] : memref<112x1xf32, #tpu.memory_space<vmem>>, vector<8x1xf32>
    %c16_8 = arith.constant 16 : index
    %c0_9 = arith.constant 0 : index
    %6 = vector.load %arg3[%c16_8, %c0_9] : memref<112x1xf32, #tpu.memory_space<vmem>>, vector<16x1xf32>
    %c32_10 = arith.constant 32 : index
    %c0_11 = arith.constant 0 : index
    %7 = vector.load %arg3[%c32_10, %c0_11] : memref<112x1xf32, #tpu.memory_space<vmem>>, vector<64x1xf32>
    %c96_12 = arith.constant 96 : index
    %c0_13 = arith.constant 0 : index
    %8 = vector.load %arg3[%c96_12, %c0_13] : memref<112x1xf32, #tpu.memory_space<vmem>>, vector<3x1xf32>
    %cst = arith.constant dense<0.000000e+00> : vector<8x128xf32>
    %9 = tpu.matmul %1, %0, %cst {dimension_numbers = #tpu.dot_dimension_numbers<[1], [0], [0], [1], [0, 0, 1, 1], [], []>} : vector<8x4xbf16>, vector<4x128xbf16>, vector<8x128xf32> -> vector<8x128xf32>
    %10 = vector.broadcast %5 : vector<8x1xf32> to vector<8x128xf32>
    %11 = arith.addf %9, %10 : vector<8x128xf32>
    %12 = math.tanh %11 : vector<8x128xf32>
    %13 = arith.truncf %12 : vector<8x128xf32> to vector<8x128xbf16>
    %cst_14 = arith.constant dense<0.000000e+00> : vector<16x128xf32>
    %14 = tpu.matmul %2, %13, %cst_14 {dimension_numbers = #tpu.dot_dimension_numbers<[1], [0], [0], [1], [0, 0, 1, 1], [], []>} : vector<16x8xbf16>, vector<8x128xbf16>, vector<16x128xf32> -> vector<16x128xf32>
    %15 = vector.broadcast %6 : vector<16x1xf32> to vector<16x128xf32>
    %16 = arith.addf %14, %15 : vector<16x128xf32>
    %17 = math.tanh %16 : vector<16x128xf32>
    %18 = arith.truncf %17 : vector<16x128xf32> to vector<16x128xbf16>
    %cst_15 = arith.constant dense<0.000000e+00> : vector<64x128xf32>
    %19 = tpu.matmul %3, %18, %cst_15 {dimension_numbers = #tpu.dot_dimension_numbers<[1], [0], [0], [1], [0, 0, 1, 1], [], []>} : vector<64x16xbf16>, vector<16x128xbf16>, vector<64x128xf32> -> vector<64x128xf32>
    %20 = vector.broadcast %7 : vector<64x1xf32> to vector<64x128xf32>
    %21 = arith.addf %19, %20 : vector<64x128xf32>
    %22 = math.tanh %21 : vector<64x128xf32>
    %23 = arith.truncf %22 : vector<64x128xf32> to vector<64x128xbf16>
    %cst_16 = arith.constant dense<0.000000e+00> : vector<3x128xf32>
    %24 = tpu.matmul %4, %23, %cst_16 {dimension_numbers = #tpu.dot_dimension_numbers<[1], [0], [0], [1], [0, 0, 1, 1], [], []>} : vector<3x64xbf16>, vector<64x128xbf16>, vector<3x128xf32> -> vector<3x128xf32>
    %25 = vector.broadcast %8 : vector<3x1xf32> to vector<3x128xf32>
    %26 = arith.addf %24, %25 : vector<3x128xf32>
    %c0_17 = arith.constant 0 : index
    %c0_18 = arith.constant 0 : index
    %27 = vector.load %arg4[%c0_17, %c0_18] : memref<3x128xf32, #tpu.memory_space<vmem>>, vector<3x128xf32>
    tpu.vector_store %arg4[%c0_17, %c0_18], %26 {strides = array<i32>} : memref<3x128xf32, #tpu.memory_space<vmem>>, vector<3x128xf32>,
    return
  }
  func.func @transform_0(%arg0: i32) -> (i32, i32) {
    %c0_i32 = arith.constant 0 : i32
    %c0_i32_0 = arith.constant 0 : i32
    return %c0_i32, %arg0 : i32, i32
  }
  func.func @transform_1(%arg0: i32) -> (i32, i32) {
    %c0_i32 = arith.constant 0 : i32
    %c0_i32_0 = arith.constant 0 : i32
    %c0_i32_1 = arith.constant 0 : i32
    return %c0_i32, %c0_i32_0 : i32, i32
  }
  func.func @transform_2(%arg0: i32) -> (i32, i32) {
    %c0_i32 = arith.constant 0 : i32
    %c0_i32_0 = arith.constant 0 : i32
    %c0_i32_1 = arith.constant 0 : i32
    return %c0_i32, %c0_i32_0 : i32, i32
  }
  func.func @transform_3(%arg0: i32) -> (i32, i32) {
    %c0_i32 = arith.constant 0 : i32
    %c0_i32_0 = arith.constant 0 : i32
    return %c0_i32, %arg0 : i32, i32
  }
}

</mosaic_0001>

<llo_original>
// kernel: _mlp_pallas.1
$region0: #{_mlp_pallas.1}
  #allocation0 [shape = 'u32[]', space=smem, size = 0x4, offset = 0x4, fixed_abs, tag = 'smem constant byte address 0x4 - core index']
  #allocation1 [shape = 'u32[72,128]{1,0:T(1,128)}', space=vmem, size = 0x9000, scoped, tag = 'internal scratch']
  %s0 = inlined_call_operand.vmem [shape: bf16[4,128], index: 0, kind: input, shape index: {}]
  %s1 = inlined_call_operand.vmem [shape: bf16[112,64], index: 1, kind: input, shape index: {}]
  %s2 = inlined_call_operand.vmem [shape: f32[112,1], index: 2, kind: input, shape index: {}]
  %s3 = inlined_call_operand.hbm [shape: f32[3,128], index: 3, kind: output, shape index: {}]
  %s4 = sld [smem:[#allocation0]]
  $region22: #{_mlp_pallas.1} parent=0
    _
  %s6 = ssub.s32 1, %s4
  %s7 = scalar_select 0, %s6, %s4
  $region1: #{_mlp_pallas.1} parent=0
    #allocation2 [shape = 'u8[2048]{0}', space=vmem, size = 0x800, scoped, tag = 'output window, operand 0, single buffered']
    #allocation3 [shape = 's32[1]{0}', space=sflag, size = 0x4, scoped, tag = 'scoped memory for _mlp_pallas.1']
    %8 = vsyncpa [#allocation3], 0
    // Predicated region
    $region2: #{_mlp_pallas.1} parent=1 // pred_check
      _
    $region3: #{_mlp_pallas.1} parent=1 // pred_check_branch
      %10 = sbr.rel (0) target = $region5
    $region4: #{_mlp_pallas.1} parent=1 // pred_region
      _
    $region5: #{_mlp_pallas.1} parent=1 // pred_fallthru
      _
    // Predicated region
    $region6: #{_mlp_pallas.1} parent=1 // pred_check
      _
    $region7: #{_mlp_pallas.1} parent=1 // pred_check_branch
      %12 = sbr.rel (0) target = $region9
    $region8: #{_mlp_pallas.1} parent=1 // pred_region
      _
    $region9: #{_mlp_pallas.1} parent=1 // pred_fallthru
      _
    // Predicated region
    $region10: #{_mlp_pallas.1} parent=1 // pred_check
      _
    $region11: #{_mlp_pallas.1} parent=1 // pred_check_branch
      %14 = sbr.rel (0) target = $region13
    $region12: #{_mlp_pallas.1} parent=1 // pred_region
      _
    $region13: #{_mlp_pallas.1} parent=1 // pred_fallthru
      _
    %v16 = vld [vmem:[%s0] sm:$0x3]
    %v17 = vld [vmem:[%s1] sm:$0xf]
    %v18 = vld [vmem:[%s1 + $0x8] sm:$0xf]
    %v19 = vld [vmem:[%s1 + $0xc] sm:$0xf]
    %v20 = vld [vmem:[%s1 + $0x10] sm:$0xf]
    %v21 = vld [vmem:[%s1 + $0x14] sm:$0xf]
    %v22 = vld [vmem:[%s1 + $0x18] sm:$0xf]
    %v23 = vld [vmem:[%s1 + $0x1c] sm:$0xf]
    %v24 = vld [vmem:[%s1 + $0x20] sm:$0xf]
    %v25 = vld [vmem:[%s1 + $0x24] sm:$0xf]
    %v26 = vld [vmem:[%s1 + $0x28] sm:$0xf]
    %v27 = vld [vmem:[%s1 + $0x2c] sm:$0xf]
    %v28 = vld [vmem:[%s1 + $0x30] sm:$0x3]
    %v29 = vld [vmem:[%s2] sm:$0xff]
    %v30 = vld [vmem:[%s2 + $0x10] sm:$0xff]
    %v31 = vld [vmem:[%s2 + $0x18] sm:$0xff]
    %v32 = vld [vmem:[%s2 + $0x20] sm:$0xff]
    %v33 = vld [vmem:[%s2 + $0x28] sm:$0xff]
    %v34 = vld [vmem:[%s2 + $0x30] sm:$0xff]
    %v35 = vld [vmem:[%s2 + $0x38] sm:$0xff]
    %v36 = vld [vmem:[%s2 + $0x40] sm:$0xff]
    %v37 = vld [vmem:[%s2 + $0x48] sm:$0xff]
    %v38 = vld [vmem:[%s2 + $0x50] sm:$0xff]
    %v39 = vld [vmem:[%s2 + $0x58] sm:$0xff]
    %v40 = vld [vmem:[%s2 + $0x60] sm:$0x7]
    %42 = vset.pattern.permute.xlu0 0
    %43 = vperm.xlu0 %42, %v29
    %v44 = vpop.permute.xlu0 %43
    %vm46 = vcmask 31744
    %v48 = vsel %vm46, %v17, 0
    %vm50 = vcmask 1041408
    %v52 = vsel %vm50, %v16, 0
    %54 = vmatpush.bf16.msra.mxu0 0
    %55 = vmatpush.bf16.msra.mxu0 0
    %56 = vmatpush.bf16.msra.mxu0 0
    %57 = vmatpush.bf16.msra.mxu0 0
    %58 = vmatpush.bf16.msra.mxu0 0
    %59 = vmatpush.bf16.msra.mxu0 0
    %60 = vmatpush.bf16.msra.mxu0 0
    %61 = vmatpush.bf16.msra.mxu0 %v52
    %62 = vmatmul.bf16.gmra.mxu0 %v48
    %v63 = vpop.f32.mrf.mxu0
    %v64 = vadd.f32 %v44, %v63
    %v65 = vpop.f32.mrf.mxu0
    %66 = vdwg.mxu0
    %v67 = vtanh.pop %v64
    %v68 = vpack.c.bf16 %v67, %v67
    %70 = vset.pattern.permute.xlu0 0
    %71 = vperm.xlu0 %70, %v30
    %v72 = vpop.permute.xlu0 %71
    %75 = vset.pattern.permute.xlu0 0
    %76 = vperm.xlu0 %75, %v31
    %v77 = vpop.permute.xlu0 %76
    %v81 = vunpack.c.l.b16 %v18
    %v82 = vunpack.c.l.b16 %v19
    %v83 = vpack.c.b16 %v82, %v81
    %vm84 = vcmask 64512
    %v86 = vsel %vm84, %v83, 0
    %vm88 = vcmask 1043456
    %v90 = vsel %vm88, %v68, 0
    %92 = vmatpush.bf16.msra.mxu0 0
    %93 = vmatpush.bf16.msra.mxu0 0
    %94 = vmatpush.bf16.msra.mxu0 0
    %95 = vmatpush.bf16.msra.mxu0 0
    %96 = vmatpush.bf16.msra.mxu0 0
    %97 = vmatpush.bf16.msra.mxu0 0
    %98 = vmatpush.bf16.msra.mxu0 0
    %99 = vmatpush.bf16.msra.mxu0 %v90
    %100 = vmatmul.bf16.gmra.mxu0 %v86
    %v101 = vpop.f32.mrf.mxu0
    %v102 = vadd.f32 %v72, %v101
    %v103 = vpop.f32.mrf.mxu0
    %v104 = vadd.f32 %v77, %v103
    %105 = vdwg.mxu0
    %v106 = vtanh.pop %v102
    %v107 = vtanh.pop %v104
    %v108 = vpack.c.bf16 %v107, %v106
    %110 = vset.pattern.permute.xlu0 0
    %111 = vperm.xlu0 %110, %v32
    %v112 = vpop.permute.xlu0 %111
    %115 = vset.pattern.permute.xlu0 0
    %116 = vperm.xlu0 %115, %v33
    %v117 = vpop.permute.xlu0 %116
    %120 = vset.pattern.permute.xlu0 0
    %121 = vperm.xlu0 %120, %v34
    %v122 = vpop.permute.xlu0 %121
    %125 = vset.pattern.permute.xlu0 0
    %126 = vperm.xlu0 %125, %v35
    %v127 = vpop.permute.xlu0 %126
    %130 = vset.pattern.permute.xlu0 0
    %131 = vperm.xlu0 %130, %v36
    %v132 = vpop.permute.xlu0 %131
    %135 = vset.pattern.permute.xlu0 0
    %136 = vperm.xlu0 %135, %v37
    %v137 = vpop.permute.xlu0 %136
    %140 = vset.pattern.permute.xlu0 0
    %141 = vperm.xlu0 %140, %v38
    %v142 = vpop.permute.xlu0 %141
    %145 = vset.pattern.permute.xlu0 0
    %146 = vperm.xlu0 %145, %v39
    %v147 = vpop.permute.xlu0 %146
    %v157 = vunpack.c.l.b16 %v20
    %v158 = vunpack.c.l.b16 %v21
    %v159 = vunpack.c.l.b16 %v22
    %v160 = vunpack.c.l.b16 %v23
    %v161 = vunpack.c.l.b16 %v24
    %v162 = vunpack.c.l.b16 %v25
    %v163 = vunpack.c.l.b16 %v26
    %v164 = vunpack.c.l.b16 %v27
    %v165 = vpack.c.b16 %v158, %v157
    %v166 = vpack.c.b16 %v160, %v159
    %v167 = vpack.c.b16 %v162, %v161
    %v168 = vpack.c.b16 %v164, %v163
    %vm169 = vcmask 130048
    %v171 = vsel %vm169, %v165, 0
    %v174 = vsel %vm169, %v166, 0
    %v177 = vsel %vm169, %v167, 0
    %v180 = vsel %vm169, %v168, 0
    %182 = vmatpush.bf16.msra.mxu0 0
    %183 = vmatpush.bf16.msra.mxu0 0
    %184 = vmatpush.bf16.msra.mxu0 0
    %185 = vmatpush.bf16.msra.mxu0 0
    %186 = vmatpush.bf16.msra.mxu0 0
    %187 = vmatpush.bf16.msra.mxu0 0
    %188 = vmatpush.bf16.msra.mxu0 0
    %189 = vmatpush.bf16.msra.mxu0 %v108
    %190 = vmatmul.bf16.gmra.mxu0 %v171
    %v191 = vpop.f32.mrf.mxu0
    %v192 = vadd.f32 %v112, %v191
    %v193 = vpop.f32.mrf.mxu0
    %v194 = vadd.f32 %v117, %v193
    %195 = vmatmul.bf16.gmra.mxu0 %v174
    %v196 = vpop.f32.mrf.mxu0
    %v197 = vadd.f32 %v122, %v196
    %v198 = vpop.f32.mrf.mxu0
    %v199 = vadd.f32 %v127, %v198
    %200 = vmatmul.bf16.gmra.mxu0 %v177
    %v201 = vpop.f32.mrf.mxu0
    %v202 = vadd.f32 %v132, %v201
    %v203 = vpop.f32.mrf.mxu0
    %v204 = vadd.f32 %v137, %v203
    %205 = vmatmul.bf16.gmra.mxu0 %v180
    %v206 = vpop.f32.mrf.mxu0
    %v207 = vadd.f32 %v142, %v206
    %v208 = vpop.f32.mrf.mxu0
    %v209 = vadd.f32 %v147, %v208
    %210 = vdwg.mxu0
    %v211 = vtanh.pop %v192
    %v212 = vtanh.pop %v194
    %v213 = vtanh.pop %v197
    %v214 = vtanh.pop %v199
    %v215 = vtanh.pop %v202
    %v216 = vtanh.pop %v204
    %v217 = vtanh.pop %v207
    %v218 = vtanh.pop %v209
    %v219 = vpack.c.bf16 %v212, %v211
    %v220 = vpack.c.bf16 %v214, %v213
    %v221 = vpack.c.bf16 %v216, %v215
    %v222 = vpack.c.bf16 %v218, %v217
    %224 = vset.pattern.permute.xlu0 0
    %225 = vperm.xlu0 %224, %v40
    %v226 = vpop.permute.xlu0 %225
    %vm228 = vcmask 523264
    %v230 = vsel %vm228, %v28, 0
    %232 = vmatpush.bf16.msra.mxu0 0
    %233 = vmatpush.bf16.msra.mxu0 0
    %234 = vmatpush.bf16.msra.mxu0 0
    %235 = vmatpush.bf16.msra.mxu0 0
    %236 = vmatpush.bf16.msra.mxu0 %v222
    %237 = vmatpush.bf16.msra.mxu0 %v221
    %238 = vmatpush.bf16.msra.mxu0 %v220
    %239 = vmatpush.bf16.msra.mxu0 %v219
    %240 = vmatmul.bf16.gmra.mxu0 %v230
    %v241 = vpop.f32.mrf.mxu0
    %v242 = vadd.f32 %v226, %v241
    %v243 = vpop.f32.mrf.mxu0
    %244 = vdwg.mxu0
    %245 = vst [vmem:[#allocation2] sm:$0x7] %v242
    // Predicated region
    $region14: #{_mlp_pallas.1} parent=1 // pred_check
      _
    $region15: #{_mlp_pallas.1} parent=1 // pred_check_branch
      %247 = sbr.rel (0) target = $region17
    $region16: #{_mlp_pallas.1} parent=1 // pred_region
      %249 = vsyncadd [#allocation3], 0
      %s251 = sshll.u32 [#allocation2], 4
      %s252 = int_to_ptr.vmem [resolvable:$true] %s251
      %s253 = sshll.u32 %s3, 4
      %s254 = int_to_ptr.hbm [resolvable:$true] %s253
      %256 = dma.vmem_to_hbm [thread:$0]  %s252, 64, %s254, [#allocation3]
    $region17: #{_mlp_pallas.1} parent=1 // pred_fallthru
      _
    // Predicated region
    $region18: #{_mlp_pallas.1} parent=1 // pred_check
      _
    $region19: #{_mlp_pallas.1} parent=1 // pred_check_branch
      %258 = sbr.rel (0) target = $region21
    $region20: #{_mlp_pallas.1} parent=1 // pred_region
      %260 = dma.done [#allocation3], 64
    $region21: #{_mlp_pallas.1} parent=1 // pred_fallthru
      _
    %261 = vsyncpa [#allocation3], 1

</llo_original>
